<compile_context>
chip_gen: v6e
topology: v6e:2x2x1
jax: 0.10.0
libtpu: 0.0.40
codegen_flags: <defaults>
</compile_context>

<pallas_src>
import jax
import jax.numpy as jnp
from jax.experimental import pallas as pl
from jax.experimental.pallas import tpu as pltpu


# ---------------------------------------------------------------------------
# Kernels
# Grid: (batch row-tiles  [parallel], class col-tiles [arbitrary]).
# Output: (n_row_tiles, 8, 128) f32; each row-tile's loss SUM lands in
# out[i, 0, 0] (other slots zero), so the host just sums the whole array.
# ---------------------------------------------------------------------------

def _write_partial(out_ref, partial):
    """Scatter a scalar partial sum into slot [0, 0, 0] of the (1,8,128) block."""
    r = jax.lax.broadcasted_iota(jnp.int32, out_ref.shape, 1)
    c = jax.lax.broadcasted_iota(jnp.int32, out_ref.shape, 2)
    out_ref[...] = jnp.where((r == 0) & (c == 0), partial, 0.0)


def _ce_ids_kernel(ids_ref, logits_ref, out_ref, m_ref, l_ref, t_ref):
    """CE vs. integer class ids (ids < 0 mark padded rows), online logsumexp."""
    j = pl.program_id(1)
    nj = pl.num_programs(1)

    @pl.when(j == 0)
    def _():
        m_ref[...] = jnp.full_like(m_ref, -jnp.inf)   # running row max
        l_ref[...] = jnp.zeros_like(l_ref)            # running sum-exp
        t_ref[...] = jnp.zeros_like(t_ref)            # running target logit

    x = logits_ref[...].astype(jnp.float32)           # (tb, tc), widen in-reg
    ids = ids_ref[...]                                 # (tb, 1) int32
    tb, tc = x.shape

    # Gather this class-tile's contribution to the target logit.
    col = jax.lax.broadcasted_iota(jnp.int32, (tb, tc), 1) + j * tc
    t_ref[...] += jnp.sum(jnp.where(col == ids, x, 0.0), axis=-1, keepdims=True)

    # Online logsumexp across class tiles.
    m_prev = m_ref[...]
    m_new = jnp.maximum(m_prev, jnp.max(x, axis=-1, keepdims=True))
    l_ref[...] = l_ref[...] * jnp.exp(m_prev - m_new) + jnp.sum(
        jnp.exp(x - m_new), axis=-1, keepdims=True)
    m_ref[...] = m_new

    @pl.when(j == nj - 1)
    def _():
        valid = (ids >= 0).astype(jnp.float32)         # mask padded rows
        per_example = (m_ref[...] + jnp.log(l_ref[...]) - t_ref[...]) * valid
        _write_partial(out_ref, jnp.sum(per_example))


def _ce_dense_kernel(logits_ref, labels_ref, out_ref,
                     m_ref, l_ref, sy_ref, syx_ref):
    """CE vs. dense (one-hot / soft) labels; padded rows must have zero labels.

    CE = sum_j y_j*(lse - x_j) = (sum y)*lse - sum(y*x); both sums and the
    logsumexp accumulate independently across class tiles.
    """
    j = pl.program_id(1)
    nj = pl.num_programs(1)

    @pl.when(j == 0)
    def _():
        m_ref[...] = jnp.full_like(m_ref, -jnp.inf)
        l_ref[...] = jnp.zeros_like(l_ref)
        sy_ref[...] = jnp.zeros_like(sy_ref)
        syx_ref[...] = jnp.zeros_like(syx_ref)

    x = logits_ref[...].astype(jnp.float32)            # (tb, tc)
    y = labels_ref[...].astype(jnp.float32)            # (tb, tc)

    sy_ref[...] += jnp.sum(y, axis=-1, keepdims=True)
    syx_ref[...] += jnp.sum(y * x, axis=-1, keepdims=True)

    m_prev = m_ref[...]
    m_new = jnp.maximum(m_prev, jnp.max(x, axis=-1, keepdims=True))
    l_ref[...] = l_ref[...] * jnp.exp(m_prev - m_new) + jnp.sum(
        jnp.exp(x - m_new), axis=-1, keepdims=True)
    m_ref[...] = m_new

    @pl.when(j == nj - 1)
    def _():
        lse = m_ref[...] + jnp.log(l_ref[...])
        per_example = sy_ref[...] * lse - syx_ref[...]
        _write_partial(out_ref, jnp.sum(per_example))


# ---------------------------------------------------------------------------
# Host-side planning helpers
# ---------------------------------------------------------------------------

_ROW_TILE_CAP = 4096   # keeps (tb,1)-shaped VMEM scratch / ids blocks small


def _round_up(x, m):
    return -(-x // m) * m


def _vmem_plan():
    """(streamed-block-set bytes, explicit scoped-VMEM limit), per generation."""
    try:
        cap = int(pltpu.get_tpu_info().vmem_capacity_bytes)
    except Exception:
        cap = 64 * 1024 * 1024           # conservative: v7x-sized VMEM
    # Bytes for ONE set of streamed input blocks (Pallas double-buffers -> x2).
    # ~8 MiB blocks sit comfortably on the measured HBM-roofline plateau.
    blk_set = max(1 << 20, min(8 << 20, cap // 8))
    # Explicit limit: 2x streamed buffers + headroom for scratch/ids/output,
    # clamped well under physical capacity (matters on v7x's 64 MiB VMEM).
    vmem_limit = int(min(cap // 2, 2 * blk_set + (16 << 20)))
    return blk_set, vmem_limit


def _choose_tiles(b, c, wide_itemsizes, blk_set):
    """Pick (row_tile, class_tile).

    Keeps one double-buffered block-set within `blk_set` bytes.  Uses the full
    (128-padded) class axis when it fits; otherwise tiles the class axis and
    the kernels run an online logsumexp.  Row tiles are rebalanced so padding
    waste is small and there are >=2 row tiles when possible (v7x megacore).
    """
    min_it = min(wide_itemsizes)
    sub = 8 * max(1, 4 // min_it)              # sublane packing (8/16/32 rows)
    bpc = sum(wide_itemsizes)                  # streamed bytes per (row, class)
    c128 = _round_up(c, 128)

    rows_full_c = blk_set // max(1, c128 * bpc)
    if rows_full_c >= sub:
        tc = c128
        tb0 = min(rows_full_c, _ROW_TILE_CAP, _round_up(b, sub))
        tb0 = max(sub, (tb0 // sub) * sub)
        n_tiles = -(-b // tb0)
        if b >= 2 * sub:
            n_tiles = max(n_tiles, 2)          # let both v7x TCs split the batch
        tb = max(sub, _round_up(-(-b // n_tiles), sub))
    else:
        # Huge class count: minimum rows, widest 128-aligned class tile.
        tb = sub
        tc = min(c128, max(128, (blk_set // max(1, tb * bpc)) // 128 * 128))
    return tb, tc


def _pad_logits(logits, b_pad, c_pad):
    b, c = logits.shape
    if c_pad != c:
        # Padded class columns get the dtype's most-negative finite value so
        # they vanish from max / sum-exp; padded rows are plain zeros.
        neg = float(jnp.finfo(logits.dtype).min)
        logits = jnp.pad(logits, ((0, 0), (0, c_pad - c)), constant_values=neg)
    if b_pad != b:
        logits = jnp.pad(logits, ((0, b_pad - b), (0, 0)))
    return logits


# ---------------------------------------------------------------------------
# pallas_call wrappers
# ---------------------------------------------------------------------------

def _ce_from_ids(logits, ids, batch, tiles=None):
    b, c = logits.shape
    it = jnp.dtype(logits.dtype).itemsize
    blk_set, vmem_limit = _vmem_plan()
    tb, tc = _choose_tiles(b, c, (it,), blk_set) if tiles is None else tiles
    b_pad, c_pad = _round_up(b, tb), _round_up(c, tc)
    ni, nj = b_pad // tb, c_pad // tc

    logits_p = _pad_logits(logits, b_pad, c_pad)
    ids_p = ids if b_pad == b else jnp.pad(
        ids, ((0, b_pad - b), (0, 0)), constant_values=-1)

    partials = pl.pallas_call(
        _ce_ids_kernel,
        out_shape=jax.ShapeDtypeStruct((ni, 8, 128), jnp.float32),
        grid_spec=pltpu.PrefetchScalarGridSpec(
            num_scalar_prefetch=0,
            grid=(ni, nj),
            in_specs=[
                pl.BlockSpec((tb, 1), lambda i, j: (i, 0)),    # class ids
                pl.BlockSpec((tb, tc), lambda i, j: (i, j)),   # logits
            ],
            out_specs=pl.BlockSpec((1, 8, 128), lambda i, j: (i, 0, 0)),
            scratch_shapes=[pltpu.VMEM((tb, 1), jnp.float32)] * 3,
        ),
        compiler_params=pltpu.CompilerParams(
            dimension_semantics=("parallel", "arbitrary"),
            vmem_limit_bytes=vmem_limit),
        cost_estimate=pl.CostEstimate(
            flops=6 * b_pad * c_pad,
            transcendentals=b_pad * c_pad,
            bytes_accessed=b_pad * c_pad * it + b_pad * 4 + ni * 8 * 128 * 4),
    )(ids_p, logits_p)
    return jnp.sum(partials) / jnp.float32(batch)


def _ce_from_dense(logits, labels, batch, tiles=None):
    b, c = logits.shape
    it_x = jnp.dtype(logits.dtype).itemsize
    it_y = jnp.dtype(labels.dtype).itemsize
    blk_set, vmem_limit = _vmem_plan()
    tb, tc = (_choose_tiles(b, c, (it_x, it_y), blk_set)
              if tiles is None else tiles)
    b_pad, c_pad = _round_up(b, tb), _round_up(c, tc)
    ni, nj = b_pad // tb, c_pad // tc

    logits_p = _pad_logits(logits, b_pad, c_pad)
    labels_p = labels
    if (b_pad, c_pad) != (b, c):
        labels_p = jnp.pad(labels, ((0, b_pad - b), (0, c_pad - c)))  # zeros

    partials = pl.pallas_call(
        _ce_dense_kernel,
        out_shape=jax.ShapeDtypeStruct((ni, 8, 128), jnp.float32),
        grid_spec=pltpu.PrefetchScalarGridSpec(
            num_scalar_prefetch=0,
            grid=(ni, nj),
            in_specs=[
                pl.BlockSpec((tb, tc), lambda i, j: (i, j)),   # logits
                pl.BlockSpec((tb, tc), lambda i, j: (i, j)),   # labels
            ],
            out_specs=pl.BlockSpec((1, 8, 128), lambda i, j: (i, 0, 0)),
            scratch_shapes=[pltpu.VMEM((tb, 1), jnp.float32)] * 4,
        ),
        compiler_params=pltpu.CompilerParams(
            dimension_semantics=("parallel", "arbitrary"),
            vmem_limit_bytes=vmem_limit),
        cost_estimate=pl.CostEstimate(
            flops=8 * b_pad * c_pad,
            transcendentals=b_pad * c_pad,
            bytes_accessed=b_pad * c_pad * (it_x + it_y) + ni * 8 * 128 * 4),
    )(logits_p, labels_p)
    return jnp.sum(partials) / jnp.float32(batch)


# ---------------------------------------------------------------------------
# Module wrapper
# ---------------------------------------------------------------------------

class BaseClassificationLossPallas:
    """JAX/Pallas analog of BaseClassificationLoss (canonical CE hot path).

    TODO(synk): the PyTorch base class forward() is abstract; subclass-specific
    terms (e.g. quantization losses on code_logits) are not defined here.
    """

    def __init__(self, min_pallas_elements=0):
        self.losses = {}
        # Below this element count, Pallas launch overhead dominates; route to
        # plain XLA instead. Default 0 => always use the kernel.
        self.min_pallas_elements = min_pallas_elements

    def __call__(self, logits, code_logits, labels, onehot=True):
        del code_logits  # accepted for API parity; never copied on-chip
        logits = jnp.asarray(logits)
        if not jnp.issubdtype(logits.dtype, jnp.floating):
            logits = logits.astype(jnp.float32)    # keep bf16 as bf16 in HBM
        batch, num_classes = logits.shape

        labels = jnp.asarray(labels)
        # 1-D labels are class ids; they always take the cheap ids path (reads
        # B*4 bytes of labels instead of a dense B*C one-hot), even if the
        # caller set onehot=True.
        use_dense = bool(onehot) and labels.ndim >= 2

        if batch * num_classes < self.min_pallas_elements:
            # Tiny-problem fallback: let XLA fuse it.
            lp = jax.nn.log_softmax(logits.astype(jnp.float32), axis=-1)
            if use_dense:
                y = labels.astype(jnp.float32)
                loss = jnp.mean(-jnp.sum(y * lp, axis=-1))
            else:
                ids = labels.reshape(batch).astype(jnp.int32)
                loss = jnp.mean(-jnp.take_along_axis(lp, ids[:, None], axis=-1))
        elif use_dense:
            # Dense (one-hot or genuinely soft / label-smoothed) targets.
            y = labels
            if not jnp.issubdtype(y.dtype, jnp.floating):
                y = y.astype(jnp.float32)
            loss = _ce_from_dense(logits, y, batch)
        else:
            # Integer class ids: logits are the only large HBM read.
            ids = labels.reshape(batch, 1).astype(jnp.int32)
            loss = _ce_from_ids(logits, ids, batch)

        self.losses["ce"] = loss
        return loss


# ---------------------------------------------------------------------------
# Demo / self-check
# ---------------------------------------------------------------------------

if __name__ == "__main__":
    key = jax.random.PRNGKey(0)
    k1, k2, k3, k4, k5 = jax.random.split(key, 5)

    B, C, K = 8, 128, 16  # batch, num classes (lane-aligned), code bits
    logits = jax.random.normal(k1, (B, C), dtype=jnp.float32)
    code_logits = jax.random.normal(k2, (B, K), dtype=jnp.float32)
    label_ids = jax.random.randint(k3, (B,), 0, C)
    labels_onehot = jax.nn.one_hot(label_ids, C, dtype=jnp.float32)

    loss_mod = BaseClassificationLossPallas()

    # Fast path (integer ids) and dense path (one-hot / soft targets).
    loss_ids = loss_mod(logits, code_logits, label_ids, onehot=False)
    loss_dense = loss_mod(logits, code_logits, labels_onehot, onehot=True)
    jax.block_until_ready((loss_ids, loss_dense))

    ref = jnp.mean(
        -jnp.sum(labels_onehot * jax.nn.log_softmax(logits, axis=-1), axis=-1))
    assert jnp.allclose(loss_ids, ref, atol=1e-5, rtol=1e-5), (loss_ids, ref)
    assert jnp.allclose(loss_dense, ref, atol=1e-5, rtol=1e-5), (loss_dense, ref)

    # Non-aligned batch and class counts exercise row + class (128) padding.
    B2, C2 = 10, 100
    logits2 = jax.random.normal(k4, (B2, C2), dtype=jnp.float32)
    ids2 = jax.random.randint(k5, (B2,), 0, C2)
    oh2 = jax.nn.one_hot(ids2, C2, dtype=jnp.float32)
    ref2 = jnp.mean(
        -jnp.sum(oh2 * jax.nn.log_softmax(logits2, axis=-1), axis=-1))
    l2a = loss_mod(logits2, code_logits, ids2, onehot=False)
    l2b = loss_mod(logits2, code_logits, oh2, onehot=True)
    jax.block_until_ready((l2a, l2b))
    assert jnp.allclose(l2a, ref2, atol=1e-5, rtol=1e-5), (l2a, ref2)
    assert jnp.allclose(l2b, ref2, atol=1e-5, rtol=1e-5), (l2b, ref2)

    # Force the class-tiled (online-logsumexp) path at a small size.
    B3, C3 = 8, 256
    logits3 = jax.random.normal(k1, (B3, C3), dtype=jnp.float32)
    ids3 = jax.random.randint(k2, (B3,), 0, C3)
    oh3 = jax.nn.one_hot(ids3, C3, dtype=jnp.float32)
    ref3 = jnp.mean(
        -jnp.sum(oh3 * jax.nn.log_softmax(logits3, axis=-1), axis=-1))
    l3a = _ce_from_ids(logits3, ids3.reshape(B3, 1).astype(jnp.int32), B3,
                       tiles=(8, 128))
    l3b = _ce_from_dense(logits3, oh3, B3, tiles=(8, 128))
    jax.block_until_ready((l3a, l3b))
    assert jnp.allclose(l3a, ref3, atol=1e-5, rtol=1e-5), (l3a, ref3)
    assert jnp.allclose(l3b, ref3, atol=1e-5, rtol=1e-5), (l3b, ref3)

    # bf16 logits: wrapper must not upcast in HBM; kernel widens in-register.
    logits_bf16 = logits.astype(jnp.bfloat16)
    loss_bf16 = loss_mod(logits_bf16, code_logits, label_ids, onehot=False)
    jax.block_until_ready(loss_bf16)
    ref_bf16 = jnp.mean(
        -jnp.sum(labels_onehot
                 * jax.nn.log_softmax(logits_bf16.astype(jnp.float32), axis=-1),
                 axis=-1))
    assert jnp.allclose(loss_bf16, ref_bf16, atol=2e-2, rtol=2e-2), (
        loss_bf16, ref_bf16)

    print("KERNEL_OK")
</pallas_src>

<mosaic_0001>
module attributes {stable_mosaic.version = 11 : i64} {
  func.func @_ce_ids_kernel(%arg0: i32, %arg1: i32, %arg2: memref<8x1xi32, #tpu.memory_space<vmem>>, %arg3: memref<8x128xf32, #tpu.memory_space<vmem>>, %arg4: memref<1x8x128xf32, #tpu.memory_space<vmem>>, %arg5: memref<8x1xf32, #tpu.memory_space<vmem>>, %arg6: memref<8x1xf32, #tpu.memory_space<vmem>>, %arg7: memref<8x1xf32, #tpu.memory_space<vmem>>) attributes {dimension_semantics = [#tpu.dimension_semantics<parallel>, #tpu.dimension_semantics<arbitrary>], iteration_bounds = array<i64: 1, 1>, scalar_prefetch = 0 : i64, scratch_operands = 3 : i64, tpu.core_type = #tpu.core_type<tc>, window_params = [{transform_indices = @transform_0, window_bounds = array<i64: 8, 1>}, {transform_indices = @transform_1, window_bounds = array<i64: 8, 128>}, {transform_indices = @transform_2, window_bounds = array<i64: 1, 8, 128>}]} {
    %c0_i32 = arith.constant 0 : i32
    %0 = arith.cmpi eq, %arg1, %c0_i32 : i32
    %1 = arith.extui %0 : i1 to i32
    %c0_i32_0 = arith.constant 0 : i32
    %2 = arith.cmpi ne, %1, %c0_i32_0 : i32
    scf.if %2 {
      %cst_21 = arith.constant 0xFF800000 : f32
      %37 = vector.broadcast %cst_21 : f32 to vector<8x1xf32>
      %c0_22 = arith.constant 0 : index
      %c0_23 = arith.constant 0 : index
      %38 = vector.load %arg5[%c0_22, %c0_23] : memref<8x1xf32, #tpu.memory_space<vmem>>, vector<8x1xf32>
      tpu.vector_store %arg5[%c0_22, %c0_23], %37 {strides = array<i32>} : memref<8x1xf32, #tpu.memory_space<vmem>>, vector<8x1xf32>,
      %cst_24 = arith.constant 0.000000e+00 : f32
      %39 = vector.broadcast %cst_24 : f32 to vector<8x1xf32>
      %c0_25 = arith.constant 0 : index
      %c0_26 = arith.constant 0 : index
      %40 = vector.load %arg6[%c0_25, %c0_26] : memref<8x1xf32, #tpu.memory_space<vmem>>, vector<8x1xf32>
      tpu.vector_store %arg6[%c0_25, %c0_26], %39 {strides = array<i32>} : memref<8x1xf32, #tpu.memory_space<vmem>>, vector<8x1xf32>,
      %cst_27 = arith.constant 0.000000e+00 : f32
      %41 = vector.broadcast %cst_27 : f32 to vector<8x1xf32>
      %c0_28 = arith.constant 0 : index
      %c0_29 = arith.constant 0 : index
      %42 = vector.load %arg7[%c0_28, %c0_29] : memref<8x1xf32, #tpu.memory_space<vmem>>, vector<8x1xf32>
      tpu.vector_store %arg7[%c0_28, %c0_29], %41 {strides = array<i32>} : memref<8x1xf32, #tpu.memory_space<vmem>>, vector<8x1xf32>,
    } else {
    }
    %c0 = arith.constant 0 : index
    %c0_1 = arith.constant 0 : index
    %3 = vector.load %arg3[%c0, %c0_1] : memref<8x128xf32, #tpu.memory_space<vmem>>, vector<8x128xf32>
    %c0_2 = arith.constant 0 : index
    %c0_3 = arith.constant 0 : index
    %4 = vector.load %arg2[%c0_2, %c0_3] : memref<8x1xi32, #tpu.memory_space<vmem>>, vector<8x1xi32>
    %5 = tpu.iota {dimensions = array<i32: 1>} : vector<8x128xi32>
    %c128_i32 = arith.constant 128 : i32
    %6 = arith.muli %arg1, %c128_i32 : i32
    %7 = vector.broadcast %6 : i32 to vector<8x128xi32>
    %8 = arith.addi %5, %7 : vector<8x128xi32>
    %c0_4 = arith.constant 0 : index
    %c0_5 = arith.constant 0 : index
    %9 = vector.load %arg7[%c0_4, %c0_5] : memref<8x1xf32, #tpu.memory_space<vmem>>, vector<8x1xf32>
    %10 = vector.broadcast %4 : vector<8x1xi32> to vector<8x128xi32>
    %11 = arith.cmpi eq, %8, %10 : vector<8x128xi32>
    %cst = arith.constant 0.000000e+00 : f32
    %12 = vector.broadcast %cst : f32 to vector<8x128xf32>
    %13 = arith.select %11, %3, %12 : vector<8x128xi1>, vector<8x128xf32>
    %cst_6 = arith.constant dense<0.000000e+00> : vector<8xf32>
    %14 = vector.multi_reduction <add>, %13, %cst_6 [1] : vector<8x128xf32> to vector<8xf32>
    %15 = vector.shape_cast %14 : vector<8xf32> to vector<8x1xf32>
    %16 = arith.addf %9, %15 : vector<8x1xf32>
    %c0_7 = arith.constant 0 : index
    %c0_8 = arith.constant 0 : index
    %17 = vector.load %arg7[%c0_7, %c0_8] : memref<8x1xf32, #tpu.memory_space<vmem>>, vector<8x1xf32>
    tpu.vector_store %arg7[%c0_7, %c0_8], %16 {strides = array<i32>} : memref<8x1xf32, #tpu.memory_space<vmem>>, vector<8x1xf32>,
    %c0_9 = arith.constant 0 : index
    %c0_10 = arith.constant 0 : index
    %18 = vector.load %arg5[%c0_9, %c0_10] : memref<8x1xf32, #tpu.memory_space<vmem>>, vector<8x1xf32>
    %cst_11 = arith.constant dense<0xFF800000> : vector<8xf32>
    %19 = vector.multi_reduction <maximumf>, %3, %cst_11 [1] : vector<8x128xf32> to vector<8xf32>
    %20 = vector.shape_cast %19 : vector<8xf32> to vector<8x1xf32>
    %21 = arith.maximumf %18, %20 : vector<8x1xf32>
    %c0_12 = arith.constant 0 : index
    %c0_13 = arith.constant 0 : index
    %22 = vector.load %arg6[%c0_12, %c0_13] : memref<8x1xf32, #tpu.memory_space<vmem>>, vector<8x1xf32>
    %23 = arith.subf %18, %21 : vector<8x1xf32>
    %24 = math.exp %23 : vector<8x1xf32>
    %25 = arith.mulf %22, %24 : vector<8x1xf32>
    %26 = vector.broadcast %21 : vector<8x1xf32> to vector<8x128xf32>
    %27 = arith.subf %3, %26 : vector<8x128xf32>
    %28 = math.exp %27 : vector<8x128xf32>
    %cst_14 = arith.constant dense<0.000000e+00> : vector<8xf32>
    %29 = vector.multi_reduction <add>, %28, %cst_14 [1] : vector<8x128xf32> to vector<8xf32>
    %30 = vector.shape_cast %29 : vector<8xf32> to vector<8x1xf32>
    %31 = arith.addf %25, %30 : vector<8x1xf32>
    %c0_15 = arith.constant 0 : index
    %c0_16 = arith.constant 0 : index
    %32 = vector.load %arg6[%c0_15, %c0_16] : memref<8x1xf32, #tpu.memory_space<vmem>>, vector<8x1xf32>
    tpu.vector_store %arg6[%c0_15, %c0_16], %31 {strides = array<i32>} : memref<8x1xf32, #tpu.memory_space<vmem>>, vector<8x1xf32>,
    %c0_17 = arith.constant 0 : index
    %c0_18 = arith.constant 0 : index
    %33 = vector.load %arg5[%c0_17, %c0_18] : memref<8x1xf32, #tpu.memory_space<vmem>>, vector<8x1xf32>
    tpu.vector_store %arg5[%c0_17, %c0_18], %21 {strides = array<i32>} : memref<8x1xf32, #tpu.memory_space<vmem>>, vector<8x1xf32>,
    %c0_i32_19 = arith.constant 0 : i32
    %34 = arith.cmpi eq, %arg1, %c0_i32_19 : i32
    %35 = arith.extui %34 : i1 to i32
    %c0_i32_20 = arith.constant 0 : i32
    %36 = arith.cmpi ne, %35, %c0_i32_20 : i32
    scf.if %36 {
      %c0_i32_21 = arith.constant 0 : i32
      %37 = vector.broadcast %c0_i32_21 : i32 to vector<8x1xi32>
      %38 = arith.cmpi sge, %4, %37 : vector<8x1xi32>
      %39 = arith.extui %38 : vector<8x1xi1> to vector<8x1xi32>
      %40 = arith.sitofp %39 : vector<8x1xi32> to vector<8x1xf32>
      %c0_22 = arith.constant 0 : index
      %c0_23 = arith.constant 0 : index
      %41 = vector.load %arg5[%c0_22, %c0_23] : memref<8x1xf32, #tpu.memory_space<vmem>>, vector<8x1xf32>
      %c0_24 = arith.constant 0 : index
      %c0_25 = arith.constant 0 : index
      %42 = vector.load %arg6[%c0_24, %c0_25] : memref<8x1xf32, #tpu.memory_space<vmem>>, vector<8x1xf32>
      %43 = math.log %42 : vector<8x1xf32>
      %44 = arith.addf %41, %43 : vector<8x1xf32>
      %c0_26 = arith.constant 0 : index
      %c0_27 = arith.constant 0 : index
      %45 = vector.load %arg7[%c0_26, %c0_27] : memref<8x1xf32, #tpu.memory_space<vmem>>, vector<8x1xf32>
      %46 = arith.subf %44, %45 : vector<8x1xf32>
      %47 = arith.mulf %46, %40 : vector<8x1xf32>
      %48 = vector.shape_cast %47 : vector<8x1xf32> to vector<1x8x1xf32>
      %cst_28 = arith.constant dense<0.000000e+00> : vector<1xf32>
      %49 = vector.multi_reduction <add>, %48, %cst_28 [1, 2] : vector<1x8x1xf32> to vector<1xf32>
      %50 = vector.shape_cast %49 : vector<1xf32> to vector<1x1x1xf32>
      %51 = vector.extract %50[0, 0, 0] : f32 from vector<1x1x1xf32>
      %52 = tpu.iota {dimensions = array<i32: 1>} : vector<1x8x128xi32>
      %53 = tpu.iota {dimensions = array<i32: 2>} : vector<1x8x128xi32>
      %c0_i32_29 = arith.constant 0 : i32
      %54 = vector.broadcast %c0_i32_29 : i32 to vector<1x8x128xi32>
      %55 = arith.cmpi eq, %52, %54 : vector<1x8x128xi32>
      %c0_i32_30 = arith.constant 0 : i32
      %56 = vector.broadcast %c0_i32_30 : i32 to vector<1x8x128xi32>
      %57 = arith.cmpi eq, %53, %56 : vector<1x8x128xi32>
      %58 = arith.andi %55, %57 : vector<1x8x128xi1>
      %cst_31 = arith.constant 0.000000e+00 : f32
      %59 = vector.broadcast %51 : f32 to vector<1x8x128xf32>
      %60 = vector.broadcast %cst_31 : f32 to vector<1x8x128xf32>
      %61 = arith.select %58, %59, %60 : vector<1x8x128xi1>, vector<1x8x128xf32>
      %c0_32 = arith.constant 0 : index
      %c0_33 = arith.constant 0 : index
      %c0_34 = arith.constant 0 : index
      %62 = vector.load %arg4[%c0_32, %c0_33, %c0_34] : memref<1x8x128xf32, #tpu.memory_space<vmem>>, vector<1x8x128xf32>
      tpu.vector_store %arg4[%c0_32, %c0_33, %c0_34], %61 {strides = array<i32>} : memref<1x8x128xf32, #tpu.memory_space<vmem>>, vector<1x8x128xf32>,
    } else {
    }
    return
  }
  func.func @transform_0(%arg0: i32, %arg1: i32) -> (i32, i32) {
    %c0_i32 = arith.constant 0 : i32
    %c0_i32_0 = arith.constant 0 : i32
    return %arg0, %c0_i32 : i32, i32
  }
  func.func @transform_1(%arg0: i32, %arg1: i32) -> (i32, i32) {
    %c0_i32 = arith.constant 0 : i32
    return %arg0, %arg1 : i32, i32
  }
  func.func @transform_2(%arg0: i32, %arg1: i32) -> (i32, i32, i32) {
    %c0_i32 = arith.constant 0 : i32
    %c0_i32_0 = arith.constant 0 : i32
    %c0_i32_1 = arith.constant 0 : i32
    return %arg0, %c0_i32, %c0_i32_0 : i32, i32, i32
  }
}

</mosaic_0001>

<llo_original>
// kernel: tpu_custom_call.1
$region0: #{tpu_custom_call.1}
  #allocation0 [shape = 'u32[]', space=smem, size = 0x4, offset = 0x4, fixed_abs, tag = 'smem constant byte address 0x4 - core index']
  #allocation1 [shape = 'u32[144,128]{1,0:T(1,128)}', space=vmem, size = 0x12000, scoped, tag = 'internal scratch']
  #allocation2 [shape = 'f32[8,1]{1,0:T(8,128)}', space=vmem, size = 0x1000, scoped, tag = 'scratch operand']
  #allocation3 [shape = 'f32[8,1]{1,0:T(8,128)}', space=vmem, size = 0x1000, scoped, tag = 'scratch operand']
  #allocation4 [shape = 'f32[8,1]{1,0:T(8,128)}', space=vmem, size = 0x1000, scoped, tag = 'scratch operand']
  %s0 = inlined_call_operand.vmem [shape: s32[8,1], index: 0, kind: input, shape index: {}]
  %s1 = inlined_call_operand.vmem [shape: f32[8,128], index: 1, kind: input, shape index: {}]
  %s2 = inlined_call_operand.hbm [shape: f32[1,8,128], index: 2, kind: output, shape index: {}]
  %s3 = sld [smem:[#allocation0]]
  $region26: #{tpu_custom_call.1} parent=0
    _
  %s5 = ssub.s32 1, %s3
  %s6 = scalar_select 0, %s5, %s3
  $region1: #{tpu_custom_call.1} parent=0
    #allocation5 [shape = 'u8[4096]{0}', space=vmem, size = 0x1000, scoped, tag = 'output window, operand 0, single buffered']
    #allocation6 [shape = 's32[1]{0}', space=sflag, size = 0x4, scoped, tag = 'scoped memory for tpu_custom_call.1']
    %7 = vsyncpa [#allocation6], 0
    // Predicated region
    $region2: #{tpu_custom_call.1} parent=1 // pred_check
      _
    $region3: #{tpu_custom_call.1} parent=1 // pred_check_branch
      %9 = sbr.rel (0) target = $region5
    $region4: #{tpu_custom_call.1} parent=1 // pred_region
      _
    $region5: #{tpu_custom_call.1} parent=1 // pred_fallthru
      _
    // Predicated region
    $region6: #{tpu_custom_call.1} parent=1 // pred_check
      _
    $region7: #{tpu_custom_call.1} parent=1 // pred_check_branch
      %11 = sbr.rel (0) target = $region9
    $region8: #{tpu_custom_call.1} parent=1 // pred_region
      _
    $region9: #{tpu_custom_call.1} parent=1 // pred_fallthru
      _
    %p12 = scmp.eq.s32.totalorder 0, 0
    // Predicated region
    $region10: #{tpu_custom_call.1} parent=1 // pred_check
      %p13 = pneg %p12
    $region11: #{tpu_custom_call.1} parent=1 // pred_check_branch
      %15 = sbr.rel (%p13) target = $region13
    $region12: #{tpu_custom_call.1} parent=1 // pred_region
      %vm16 = vcmask 7168
      %17 = vst.msk [vmem:[#allocation2] sm:$0xff] %vm16, -inf
      %18 = vst.msk [vmem:[#allocation3] sm:$0xff] %vm16, 0.0
      %19 = vst.msk [vmem:[#allocation4] sm:$0xff] %vm16, 0.0
    $region13: #{tpu_custom_call.1} parent=1 // pred_fallthru
      _
    %v20 = vld [vmem:[%s1] sm:$0xff]
    %v21 = vld [vmem:[%s0] sm:$0xff]
    %v22 = vlaneseq
    %v23 = vand.u32 %v22, 127
    %s24 = smul.u32 0, 128
    %v25 = vstv %s24
    %v26 = vadd.s32 %v23, %v25
    %v27 = vld [vmem:[#allocation4] sm:$0xff]
    %28 = vset.pattern.permute.xlu0 0
    %29 = vperm.xlu0 %28, %v21
    %v30 = vpop.permute.xlu0 %29
    %vm31 = vcmp.eq.s32.totalorder %v26, %v30
    %v32 = vsel %vm31, %v20, 0.0
    %33 = vadd.xlane.f32.xlu0 %v32
    %v34 = vpop.xlane.xlu0 %33
    %v35 = vadd.f32 %v27, %v34
    %vm36 = vcmask 7168
    %37 = vst.msk [vmem:[#allocation4] sm:$0xff] %vm36, %v35
    %v38 = vld [vmem:[#allocation2] sm:$0xff]
    %39 = vmax.xlane.f32.xlu0 %v20
    %v40 = vpop.xlane.xlu0 %39
    %v41 = vmax.f32 %v38, %v40
    %v42 = vld [vmem:[#allocation3] sm:$0xff]
    %v43 = vsub.f32 %v38, %v41
    %v44 = vmul.f32 %v43, 1.442695
    %v45 = vpow.pop %v44
    %v46 = vmul.f32 %v42, %v45
    %48 = vset.pattern.permute.xlu0 0
    %49 = vperm.xlu0 %48, %v41
    %v50 = vpop.permute.xlu0 %49
    %v52 = vsub.f32 %v20, %v50
    %v53 = vmul.f32 %v52, 1.442695
    %v54 = vpow.pop %v53
    %55 = vadd.xlane.f32.xlu0 %v54
    %v56 = vpop.xlane.xlu0 %55
    %v57 = vadd.f32 %v46, %v56
    %58 = vst.msk [vmem:[#allocation3] sm:$0xff] %vm36, %v57
    %59 = vst.msk [vmem:[#allocation2] sm:$0xff] %vm36, %v41
    // Predicated region
    $region14: #{tpu_custom_call.1} parent=1 // pred_check
      %p60 = pneg %p12
    $region15: #{tpu_custom_call.1} parent=1 // pred_check_branch
      %62 = sbr.rel (%p60) target = $region17
    $region16: #{tpu_custom_call.1} parent=1 // pred_region
      %vm63 = vcmp.ge.s32.totalorder %v21, 0
      %v64 = vsel %vm63, 1, 0
      %v65 = vcvt.s32.f32 %v64
      %v66 = vld [vmem:[#allocation2] sm:$0xff]
      %v67 = vld [vmem:[#allocation3] sm:$0xff]
      %v68 = vlog2.pop %v67
      %v69 = vmul.f32 %v68, 0.6931472
      %v70 = vadd.f32 %v66, %v69
      %v71 = vld [vmem:[#allocation4] sm:$0xff]
      %v72 = vsub.f32 %v70, %v71
      %v73 = vmul.f32 %v72, %v65
      %v74 = vsel %vm36, %v73, 0.0
      %75 = vadd.xlane.f32.xlu0 %v74
      %v76 = vpop.xlane.xlu0 %75
      %v77 = vrot.slane %v76, 4
      %v78 = vadd.f32 %v76, %v77
      %v79 = vrot.slane %v78, 2
      %v80 = vadd.f32 %v78, %v79
      %v81 = vrot.slane %v80, 1
      %v82 = vadd.f32 %v80, %v81
      %s83 = vtos %v82
      %v84 = vlaneseq
      %v85 = vshrl.u32 %v84, 7
      %vm86 = vcmp.eq.s32.totalorder %v85, 0
      %vm87 = vcmp.eq.s32.totalorder %v23, 0
      %vm88 = vmand %vm86, %vm87
      %v89 = vstv %s83
      %v90 = vsel %vm88, %v89, 0.0
      %91 = vst [vmem:[#allocation5] sm:$0xff] %v90
    $region17: #{tpu_custom_call.1} parent=1 // pred_fallthru
      _
    // Predicated region
    $region18: #{tpu_custom_call.1} parent=1 // pred_check
      _
    $region19: #{tpu_custom_call.1} parent=1 // pred_check_branch
      %93 = sbr.rel (0) target = $region21
    $region20: #{tpu_custom_call.1} parent=1 // pred_region
      %s95 = ssub.s32 128, 128
      %96 = vsyncadd [#allocation6], %s95
      %s98 = sshll.u32 [#allocation5], 4
      %s99 = int_to_ptr.vmem [resolvable:$true] %s98
      %101 = dma.vmem_to_hbm [thread:$0]  %s99, 128, %s2, [#allocation6]
    $region21: #{tpu_custom_call.1} parent=1 // pred_fallthru
      _
    // Predicated region
    $region22: #{tpu_custom_call.1} parent=1 // pred_check
      _
    $region23: #{tpu_custom_call.1} parent=1 // pred_check_branch
      %103 = sbr.rel (0) target = $region25
    $region24: #{tpu_custom_call.1} parent=1 // pred_region
      %104 = dma.done [#allocation6], 128
    $region25: #{tpu_custom_call.1} parent=1 // pred_fallthru
      _
    %105 = vsyncpa [#allocation6], 1

</llo_original>
